<compile_context>
chip_gen: v5e
topology: v5e:2x2
jax: 0.10.0
libtpu: 0.0.40
codegen_flags: <defaults>
</compile_context>

<pallas_src>
import functools
import math

import jax
import jax.numpy as jnp
from jax.experimental import pallas as pl
from jax.experimental.pallas import tpu as pltpu


def _sdp_softmax_kernel(q_ref, k_ref, o_ref, *, scale):
    """q_ref: (G, Sq, D), k_ref: (G, S, D), o_ref: (G, Sq, S) VMEM tiles."""
    # Fold 1/sqrt(H) into the (small) LHS, then cast both operands to bf16 so
    # the MXU does a single-pass bf16 matmul with f32 accumulation instead of
    # the multi-pass f32xf32 decomposition.
    q = (q_ref[...] * scale).astype(jnp.bfloat16)
    k = k_ref[...].astype(jnp.bfloat16)
    s = jax.lax.dot_general(
        q, k,
        dimension_numbers=(((2,), (2,)), ((0,), (0,))),   # contract D, batch G
        preferred_element_type=jnp.float32,
    )                                                     # (G, Sq, S) f32 logits
    # Numerically-stable softmax along the last axis.
    m = jnp.max(s, axis=-1, keepdims=True)
    e = jnp.exp(s - m)
    denom = jnp.sum(e, axis=-1, keepdims=True)
    # Stash exp(s - m) in the output tile and normalize in place: keeps live
    # VMEM at ~one S^2 tile, and the approx reciprocal runs on the EUP slot
    # (nearly free next to the S^2 broadcast multiply).
    o_ref[...] = e
    o_ref[...] = o_ref[...] * pl.reciprocal(denom, approx=True)


def _step_vmem_bytes(G, Sq, S, D):
    """Rough per-grid-step VMEM footprint: double-buffered tiles + intermediates."""
    in_bytes = 2 * G * Sq * D * 4 + 2 * G * S * D * 4       # q tile + k slab (f32, 2x buffered)
    out_bytes = 2 * G * Sq * S * 4                           # output tile (f32, 2x buffered)
    interm = 2 * G * Sq * S * 4 + 2 * G * (Sq + S) * D * 2   # s/e logits + bf16 operand casts
    return in_bytes + out_bytes + interm


def _pick_tiling(BH, S, D, budget):
    """Largest (G, Sq) whose per-step footprint fits, preferring >= 2 grid steps."""
    g_divs = [d for d in range(BH, 0, -1) if BH % d == 0]
    g_cands = [g for g in g_divs if BH // g >= 2] + [g for g in g_divs if BH // g < 2]
    sq_divs = [d for d in range(S, 0, -1) if S % d == 0]
    # Block second-to-last dim must be a multiple of 8 or equal the full dim.
    sq_cands = [d for d in sq_divs if d == S or (d <= 512 and d % 8 == 0)]
    if not sq_cands:
        sq_cands = [S]
    for g in g_cands:
        for sq in sq_cands:
            if _step_vmem_bytes(g, sq, S, D) <= budget:
                return g, sq
    return 1, sq_cands[-1]


def sdp_softmax(x):
    """x: (B, H, S, D) float32 -> softmax((x @ x^T) / sqrt(H), axis=-1), (B, H, S, S) f32."""
    B, H, S, D = x.shape
    scale = 1.0 / math.sqrt(H)      # torch: divide by sqrt(k.size(1)) (channel count, per spec)
    BH = B * H
    x_flat = x.reshape(BH, S, D)

    # Generation-aware VMEM budget (v5e/v6e: 128 MiB physical, v7x: 64 MiB/TC).
    try:
        info = pltpu.get_tpu_info()
        phys_vmem = int(getattr(info, "vmem_capacity_bytes", 64 * 1024 * 1024))
    except Exception:
        phys_vmem = 64 * 1024 * 1024
    budget = min(phys_vmem // 2, 48 * 1024 * 1024)

    G, Sq = _pick_tiling(BH, S, D, budget)
    num_steps = BH // G
    row_steps = S // Sq
    step_bytes = _step_vmem_bytes(G, Sq, S, D)
    vmem_limit = int(min(phys_vmem, max(32 * 1024 * 1024, step_bytes + 8 * 1024 * 1024)))

    # On multi-TensorCore parts (v7x) shard the batch-slab axis across cores.
    try:
        multi_tc = "v7" in jax.devices()[0].device_kind.lower()
    except Exception:
        multi_tc = False
    if multi_tc and num_steps % 2 == 0:
        dim_sems = (pltpu.CORE_PARALLEL, pltpu.PARALLEL)
    else:
        dim_sems = (pltpu.PARALLEL, pltpu.PARALLEL)

    cost = pl.CostEstimate(
        flops=2 * BH * S * S * D + 5 * BH * S * S,    # matmul + softmax epilogue
        transcendentals=BH * S * S + BH * S,          # exp + per-row reciprocal
        bytes_accessed=2 * BH * S * D * 4 + BH * S * S * 4,
    )

    out_flat = pl.pallas_call(
        functools.partial(_sdp_softmax_kernel, scale=scale),
        out_shape=jax.ShapeDtypeStruct((BH, S, S), jnp.float32),
        grid_spec=pltpu.PrefetchScalarGridSpec(
            num_scalar_prefetch=0,
            grid=(num_steps, row_steps),
            in_specs=[
                pl.BlockSpec((G, Sq, D), lambda i, r: (i, r, 0)),  # query row tile
                pl.BlockSpec((G, S, D), lambda i, r: (i, 0, 0)),   # full key slab (revisited)
            ],
            out_specs=pl.BlockSpec((G, Sq, S), lambda i, r: (i, r, 0)),
        ),
        compiler_params=pltpu.CompilerParams(
            dimension_semantics=dim_sems,
            vmem_limit_bytes=vmem_limit,
        ),
        cost_estimate=cost,
    )(x_flat, x_flat)

    return out_flat.reshape(B, H, S, S)


if __name__ == "__main__":
    key = jax.random.PRNGKey(0)
    k_x, _ = jax.random.split(key)

    # Small shapes consistent with the module: (batch=2, channels=3, seq=128, dim=32).
    # channels=3 keeps scale = 1/sqrt(3), identical to the original module.
    B, H, S, D = 2, 3, 128, 32
    x1 = jax.random.normal(k_x, (B, H, S, D), dtype=jnp.float32)

    out = sdp_softmax(x1)
    jax.block_until_ready(out)

    # Pure-JAX f32 reference. Kernel uses bf16 MXU operands + approx reciprocal,
    # so tolerance is loosened accordingly (probabilities are in [0, 1]).
    ref = jax.nn.softmax(
        jnp.einsum("bhsd,bhtd->bhst", x1, x1) / math.sqrt(H), axis=-1
    )
    assert out.shape == (B, H, S, S)
    assert jnp.allclose(out, ref, atol=2e-2, rtol=2e-2)

    print("KERNEL_OK")
</pallas_src>

<mosaic_0001>
module attributes {stable_mosaic.version = 11 : i64} {
  func.func @_sdp_softmax_kernel(%arg0: i32, %arg1: i32, %arg2: memref<3x128x32xf32, #tpu.memory_space<vmem>>, %arg3: memref<3x128x32xf32, #tpu.memory_space<vmem>>, %arg4: memref<3x128x128xf32, #tpu.memory_space<vmem>>) attributes {dimension_semantics = [#tpu.dimension_semantics<parallel>, #tpu.dimension_semantics<parallel>], iteration_bounds = array<i64: 2, 1>, scalar_prefetch = 0 : i64, scratch_operands = 0 : i64, tpu.core_type = #tpu.core_type<tc>, window_params = [{transform_indices = @transform_0, window_bounds = array<i64: 3, 128, 32>}, {transform_indices = @transform_1, window_bounds = array<i64: 3, 128, 32>}, {transform_indices = @transform_2, window_bounds = array<i64: 3, 128, 128>}]} {
    %c0 = arith.constant 0 : index
    %c0_0 = arith.constant 0 : index
    %c0_1 = arith.constant 0 : index
    %0 = vector.load %arg2[%c0, %c0_0, %c0_1] : memref<3x128x32xf32, #tpu.memory_space<vmem>>, vector<3x128x32xf32>
    %cst = arith.constant 0.577350259 : f32
    %1 = vector.broadcast %cst : f32 to vector<3x128x32xf32>
    %2 = arith.mulf %0, %1 : vector<3x128x32xf32>
    %3 = arith.truncf %2 : vector<3x128x32xf32> to vector<3x128x32xbf16>
    %c0_2 = arith.constant 0 : index
    %c0_3 = arith.constant 0 : index
    %c0_4 = arith.constant 0 : index
    %4 = vector.load %arg3[%c0_2, %c0_3, %c0_4] : memref<3x128x32xf32, #tpu.memory_space<vmem>>, vector<3x128x32xf32>
    %5 = arith.truncf %4 : vector<3x128x32xf32> to vector<3x128x32xbf16>
    %cst_5 = arith.constant dense<0.000000e+00> : vector<3x128x128xf32>
    %6 = tpu.matmul %3, %5, %cst_5 {dimension_numbers = #tpu.dot_dimension_numbers<[2], [2], [1], [1], [0, 0, 0, 1, 1, 1], [0], [0]>} : vector<3x128x32xbf16>, vector<3x128x32xbf16>, vector<3x128x128xf32> -> vector<3x128x128xf32>
    %cst_6 = arith.constant dense<0xFF800000> : vector<3x128xf32>
    %7 = vector.multi_reduction <maximumf>, %6, %cst_6 [2] : vector<3x128x128xf32> to vector<3x128xf32>
    %8 = vector.shape_cast %7 : vector<3x128xf32> to vector<3x128x1xf32>
    %9 = vector.broadcast %8 : vector<3x128x1xf32> to vector<3x128x128xf32>
    %10 = arith.subf %6, %9 : vector<3x128x128xf32>
    %11 = math.exp %10 : vector<3x128x128xf32>
    %cst_7 = arith.constant dense<0.000000e+00> : vector<3x128xf32>
    %12 = vector.multi_reduction <add>, %11, %cst_7 [2] : vector<3x128x128xf32> to vector<3x128xf32>
    %13 = vector.shape_cast %12 : vector<3x128xf32> to vector<3x128x1xf32>
    %c0_8 = arith.constant 0 : index
    %c0_9 = arith.constant 0 : index
    %c0_10 = arith.constant 0 : index
    %14 = vector.load %arg4[%c0_8, %c0_9, %c0_10] : memref<3x128x128xf32, #tpu.memory_space<vmem>>, vector<3x128x128xf32>
    tpu.vector_store %arg4[%c0_8, %c0_9, %c0_10], %11 {strides = array<i32>} : memref<3x128x128xf32, #tpu.memory_space<vmem>>, vector<3x128x128xf32>,
    %c0_11 = arith.constant 0 : index
    %c0_12 = arith.constant 0 : index
    %c0_13 = arith.constant 0 : index
    %15 = vector.load %arg4[%c0_11, %c0_12, %c0_13] : memref<3x128x128xf32, #tpu.memory_space<vmem>>, vector<3x128x128xf32>
    %16 = tpu.reciprocal %13 {approx = true} : vector<3x128x1xf32> -> vector<3x128x1xf32>
    %17 = vector.broadcast %16 : vector<3x128x1xf32> to vector<3x128x128xf32>
    %18 = arith.mulf %15, %17 : vector<3x128x128xf32>
    %c0_14 = arith.constant 0 : index
    %c0_15 = arith.constant 0 : index
    %c0_16 = arith.constant 0 : index
    %19 = vector.load %arg4[%c0_14, %c0_15, %c0_16] : memref<3x128x128xf32, #tpu.memory_space<vmem>>, vector<3x128x128xf32>
    tpu.vector_store %arg4[%c0_14, %c0_15, %c0_16], %18 {strides = array<i32>} : memref<3x128x128xf32, #tpu.memory_space<vmem>>, vector<3x128x128xf32>,
    return
  }
  func.func @transform_0(%arg0: i32, %arg1: i32) -> (i32, i32, i32) {
    %c0_i32 = arith.constant 0 : i32
    %c0_i32_0 = arith.constant 0 : i32
    return %arg0, %arg1, %c0_i32 : i32, i32, i32
  }
  func.func @transform_1(%arg0: i32, %arg1: i32) -> (i32, i32, i32) {
    %c0_i32 = arith.constant 0 : i32
    %c0_i32_0 = arith.constant 0 : i32
    %c0_i32_1 = arith.constant 0 : i32
    return %arg0, %c0_i32, %c0_i32_0 : i32, i32, i32
  }
  func.func @transform_2(%arg0: i32, %arg1: i32) -> (i32, i32, i32) {
    %c0_i32 = arith.constant 0 : i32
    %c0_i32_0 = arith.constant 0 : i32
    return %arg0, %arg1, %c0_i32 : i32, i32, i32
  }
}

</mosaic_0001>

<llo_original>
// kernel: tpu_custom_call.1
$region0: #{tpu_custom_call.1}
  #allocation0 [shape = 'u32[]', space=smem, size = 0x4, offset = 0x4, fixed_abs, tag = 'smem constant byte address 0x4 - core index']
  #allocation1 [shape = 'u32[72,128]{1,0:T(1,128)}', space=vmem, size = 0x9000, scoped, tag = 'internal scratch']
  %s0 = inlined_call_operand.vmem [shape: f32[6,128,32], index: 0, kind: input, shape index: {}]
  %s1 = inlined_call_operand.vmem [shape: f32[6,128,32], index: 1, kind: input, shape index: {}]
  %s2 = inlined_call_operand.hbm [shape: f32[6,128,128], index: 2, kind: output, shape index: {}]
  %s3 = sld [smem:[#allocation0]]
  $region41: #{tpu_custom_call.1} parent=0
    _
  %s5 = ssub.s32 1, %s3
  %s6 = scalar_select 0, %s5, %s3
  $region1: #{tpu_custom_call.1} parent=0
    #allocation2 [shape = 'u8[393216]{0}', space=vmem, size = 0x60000, scoped, tag = 'output window, operand 0']
    #allocation3 [shape = 's32[2]{0}', space=sflag, size = 0x8, scoped, tag = 'scoped memory for tpu_custom_call.1']
    %7 = vsyncpa [#allocation3], 0
    %s8 = scalar_lea.sflag [#allocation3], 1
    %9 = vsyncpa %s8, 0
    loop: start=0, step=1, limit=4
    $region2: #{tpu_custom_call.1} parent=1 // loop_pre_header
      _
    $region3: #{tpu_custom_call.1} parent=1 // loop_header
      %s11 = sphi 0, %s15
      %p12 = scmp.ge.s32.totalorder %s11, 4
      %s18 = sphi 0, %s30
      %s19 = sphi 0, %s26
      %s20 = sphi 0, %s18
      %s21 = sphi 0, %s19
      %s22 = sphi 0, %s20
      %s23 = sphi 0, %s21
      %s35 = sphi 0, %s37
      %s38 = sphi 0, %s35
      %s39 = sphi 0, %s38
      %s55 = sphi 0, %s39
      %s61 = sphi 0, %s63
      %s64 = sphi 0, %s61
      %s65 = sphi 0, %s64
      %s81 = sphi 0, %s65
      %s89 = sphi 0, %s91
      %s92 = sphi 0, %s89
      %s93 = sphi 0, %s92
      %s109 = sphi 0, %s93
    $region4: #{tpu_custom_call.1} parent=1 // loop_header_branch
      %14 = sbr.rel (%p12) target = $region8
    $region5: #{tpu_custom_call.1} parent=1 // loop_body
      %s16 = ssub.s32 %s11, 1
      %s17 = ssub.s32 %s11, 2
      %s24 = sadd.s32 1, %s19
      %p25 = scmp.ge.s32.totalorder %s24, 1
      %s26 = scalar_select %p25, 0, %s24
      %s27 = sadd.s32 1, %s18
      %s28 = scalar_select %p25, %s27, %s18
      %p29 = scmp.ge.s32.totalorder %s28, 2
      %s30 = scalar_select %p29, 0, %s28
      %s31 = ssub.s32 %s18, %s30
      %s32 = ssub.s32 %s19, %s26
      %s33 = sor.u32 %s31, %s32
      %p34 = scmp.eq.s32.totalorder %s33, 0
      %s36 = sadd.s32 %s35, 1
      %s37 = scalar_select %p34, %s35, %s36
      %p40 = pneg %p34
      %p41 = scmp.eq.s32.totalorder %s11, 1
      %p42 = por %p40, %p41
      %p43 = scmp.ne.s32.totalorder %s35, %s38
      %p44 = scmp.eq.s32.totalorder %s11, 0
      %p45 = por %p43, %p44
      %p46 = scmp.ne.s32.totalorder %s35, %s38
      %p47 = scmp.eq.s32.totalorder %s16, 1
      %p48 = por %p46, %p47
      %p49 = scmp.ne.s32.totalorder %s38, %s39
      %p50 = scmp.eq.s32.totalorder %s16, 0
      %p51 = por %p49, %p50
      %p52 = scmp.ne.s32.totalorder %s38, %s39
      %p53 = scmp.eq.s32.totalorder %s17, 1
      %p54 = por %p52, %p53
      %p56 = scmp.ne.s32.totalorder %s39, %s55
      %p57 = scmp.eq.s32.totalorder %s17, 0
      %p58 = por %p56, %p57
      %s59 = ssub.s32 %s18, %s30
      %p60 = scmp.eq.s32.totalorder %s59, 0
      %s62 = sadd.s32 %s61, 1
      %s63 = scalar_select %p60, %s61, %s62
      %p66 = pneg %p60
      %p67 = scmp.eq.s32.totalorder %s11, 1
      %p68 = por %p66, %p67
      %p69 = scmp.ne.s32.totalorder %s61, %s64
      %p70 = scmp.eq.s32.totalorder %s11, 0
      %p71 = por %p69, %p70
      %p72 = scmp.ne.s32.totalorder %s61, %s64
      %p73 = scmp.eq.s32.totalorder %s16, 1
      %p74 = por %p72, %p73
      %p75 = scmp.ne.s32.totalorder %s64, %s65
      %p76 = scmp.eq.s32.totalorder %s16, 0
      %p77 = por %p75, %p76
      %p78 = scmp.ne.s32.totalorder %s64, %s65
      %p79 = scmp.eq.s32.totalorder %s17, 1
      %p80 = por %p78, %p79
      %p82 = scmp.ne.s32.totalorder %s65, %s81
      %p83 = scmp.eq.s32.totalorder %s17, 0
      %p84 = por %p82, %p83
      %s85 = ssub.s32 %s18, %s30
      %s86 = ssub.s32 %s19, %s26
      %s87 = sor.u32 %s85, %s86
      %p88 = scmp.eq.s32.totalorder %s87, 0
      %s90 = sadd.s32 %s89, 1
      %s91 = scalar_select %p88, %s89, %s90
      %p94 = pneg %p88
      %p95 = scmp.eq.s32.totalorder %s11, 1
      %p96 = por %p94, %p95
      %p97 = scmp.ne.s32.totalorder %s89, %s92
      %p98 = scmp.eq.s32.totalorder %s11, 0
      %p99 = por %p97, %p98
      %p100 = scmp.ne.s32.totalorder %s89, %s92
      %p101 = scmp.eq.s32.totalorder %s16, 1
      %p102 = por %p100, %p101
      %p103 = scmp.ne.s32.totalorder %s92, %s93
      %p104 = scmp.eq.s32.totalorder %s16, 0
      %p105 = por %p103, %p104
      %p106 = scmp.ne.s32.totalorder %s92, %s93
      %p107 = scmp.eq.s32.totalorder %s17, 1
      %p108 = por %p106, %p107
      %p110 = scmp.ne.s32.totalorder %s93, %s109
      %p111 = scmp.eq.s32.totalorder %s17, 0
      %p112 = por %p110, %p111
      %p113 = scmp.le.s32.totalorder 1, %s11
      %p114 = scmp.lt.s32.totalorder %s11, 3
      %p115 = pnand %p113, %p114
      %p116 = pneg %p115
      // Predicated region
      $region9: #{tpu_custom_call.1} parent=5 // pred_check
        _
      $region10: #{tpu_custom_call.1} parent=5 // pred_check_branch
        %118 = sbr.rel (%p115) target = $region12
      $region11: #{tpu_custom_call.1} parent=5 // pred_region
        %s119 = ssub.s32 %s11, 1
      $region12: #{tpu_custom_call.1} parent=5 // pred_fallthru
        _
      %p120 = scmp.lt.s32.totalorder %s11, 2
      // Predicated region
      $region13: #{tpu_custom_call.1} parent=5 // pred_check
        %p121 = pneg %p120
      $region14: #{tpu_custom_call.1} parent=5 // pred_check_branch
        %123 = sbr.rel (%p121) target = $region16
      $region15: #{tpu_custom_call.1} parent=5 // pred_region
        // Predicated region
        $region17: #{tpu_custom_call.1} parent=15 // pred_check
          %p124 = pneg %p45
        $region18: #{tpu_custom_call.1} parent=15 // pred_check_branch
          %126 = sbr.rel (%p124) target = $region20
        $region19: #{tpu_custom_call.1} parent=15 // pred_region
          %s127 = smul.u32 3, %s18
          %s128 = smul.u32 16, %s19
          %p129 = scmp.lt.s32.totalorder %s127, 5
          %s130 = scalar_select %p129, %s127, 5
          %p131 = scmp.lt.s32.totalorder %s128, 15
          %s132 = scalar_select %p131, %s128, 15
          %s133 = smul.addr %s130, 16
          %s134 = sadd.s32 %s132, %s133
          %s135 = smul.addr %s134, 8
          %s136 = scalar_lea.vmem %s0, %s135
          %s137 = smul.u32 3, %s18
          %s138 = smul.u32 16, %s19
        $region20: #{tpu_custom_call.1} parent=15 // pred_fallthru
          _
        // Predicated region
        $region21: #{tpu_custom_call.1} parent=15 // pred_check
          %p139 = pneg %p71
        $region22: #{tpu_custom_call.1} parent=15 // pred_check_branch
          %141 = sbr.rel (%p139) target = $region24
        $region23: #{tpu_custom_call.1} parent=15 // pred_region
          %s142 = smul.u32 3, %s18
          %p143 = scmp.lt.s32.totalorder %s142, 5
          %s144 = scalar_select %p143, %s142, 5
          %s145 = smul.addr %s144, 16
          %s146 = smul.addr %s145, 8
          %s147 = scalar_lea.vmem %s1, %s146
          %s148 = smul.u32 3, %s18
        $region24: #{tpu_custom_call.1} parent=15 // pred_fallthru
          _
      $region16: #{tpu_custom_call.1} parent=5 // pred_fallthru
        _
      %p149 = scmp.le.s32.totalorder 1, %s11
      %p150 = scmp.lt.s32.totalorder %s11, 3
      %p151 = pnand %p149, %p150
      %p152 = pneg %p151
      // Predicated region
      $region25: #{tpu_custom_call.1} parent=5 // pred_check
        _
      $region26: #{tpu_custom_call.1} parent=5 // pred_check_branch
        %154 = sbr.rel (%p151) target = $region28
      $region27: #{tpu_custom_call.1} parent=5 // pred_region
        %s155 = ssub.s32 %s11, 1
        %s156 = smul.u32 3, %s20
        %s157 = smul.u32 16, %s21
        %p158 = scmp.lt.s32.totalorder %s156, 5
        %s159 = scalar_select %p158, %s156, 5
        %p160 = scmp.lt.s32.totalorder %s157, 15
        %s161 = scalar_select %p160, %s157, 15
        %s162 = smul.addr %s159, 16
        %s163 = sadd.s32 %s161, %s162
        %s164 = smul.addr %s163, 8
        %s165 = scalar_lea.vmem %s0, %s164
        %p166 = pneg %p51
        %p167 = pneg %p48
        %s168 = smul.u32 3, %s20
        %p169 = scmp.lt.s32.totalorder %s168, 5
        %s170 = scalar_select %p169, %s168, 5
        %s171 = smul.addr %s170, 16
        %s172 = smul.addr %s171, 8
        %s173 = scalar_lea.vmem %s1, %s172
        %p174 = pneg %p77
        %p175 = pneg %p74
        %p176 = pneg %p105
        %p177 = pneg %p102
        %s178 = sand.u32 %s92, 1
        %s179 = scalar_lea.sflag [#allocation3], %s178
        %s180 = sand.u32 %s92, 1
        %s181 = smul.addr %s180, 384
        %s182 = scalar_lea.vmem [#allocation2], %s181
        %s183 = smul.u32 3, %s20
        %s184 = smul.u32 16, %s21
        %p185 = scmp.lt.s32.totalorder %s183, 5
        %s186 = scalar_select %p185, %s183, 5
        %p187 = scmp.lt.s32.totalorder %s184, 15
        %s188 = scalar_select %p187, %s184, 15
        %s189 = smul.addr %s186, 16
        %s190 = sadd.s32 %s188, %s189
        %s191 = smul.addr %s190, 8
        %s192 = scalar_lea.vmem %s0, %s191
        %s193 = smul.u32 3, %s20
        %s194 = smul.u32 16, %s21
        %s195 = smul.u32 3, %s20
        %p196 = scmp.lt.s32.totalorder %s195, 5
        %s197 = scalar_select %p196, %s195, 5
        %s198 = smul.addr %s197, 16
        %s199 = smul.addr %s198, 8
        %s200 = scalar_lea.vmem %s1, %s199
        %s201 = smul.u32 3, %s20
        %s202 = smul.u32 3, %s20
        %s203 = smul.u32 16, %s21
        %v204 = vld [vmem:[%s192] sm:$0xff]
        %v205 = vld [vmem:[%s192 + $0x8] sm:$0xff]
        %v206 = vld [vmem:[%s192 + $0x10] sm:$0xff]
        %v207 = vld [vmem:[%s192 + $0x18] sm:$0xff]
        %v208 = vld [vmem:[%s192 + $0x20] sm:$0xff]
        %v209 = vld [vmem:[%s192 + $0x28] sm:$0xff]
        %v210 = vld [vmem:[%s192 + $0x30] sm:$0xff]
        %v211 = vld [vmem:[%s192 + $0x38] sm:$0xff]
        %v212 = vld [vmem:[%s192 + $0x40] sm:$0xff]
        %v213 = vld [vmem:[%s192 + $0x48] sm:$0xff]
        %v214 = vld [vmem:[%s192 + $0x50] sm:$0xff]
        %v215 = vld [vmem:[%s192 + $0x58] sm:$0xff]
        %v216 = vld [vmem:[%s192 + $0x60] sm:$0xff]
        %v217 = vld [vmem:[%s192 + $0x68] sm:$0xff]
        %v218 = vld [vmem:[%s192 + $0x70] sm:$0xff]
        %v219 = vld [vmem:[%s192 + $0x78] sm:$0xff]
        %v220 = vld [vmem:[%s192 + $0x80] sm:$0xff]
        %v221 = vld [vmem:[%s192 + $0x88] sm:$0xff]
        %v222 = vld [vmem:[%s192 + $0x90] sm:$0xff]
        %v223 = vld [vmem:[%s192 + $0x98] sm:$0xff]
        %v224 = vld [vmem:[%s192 + $0xa0] sm:$0xff]
        %v225 = vld [vmem:[%s192 + $0xa8] sm:$0xff]
        %v226 = vld [vmem:[%s192 + $0xb0] sm:$0xff]
        %v227 = vld [vmem:[%s192 + $0xb8] sm:$0xff]
        %v228 = vld [vmem:[%s192 + $0xc0] sm:$0xff]
        %v229 = vld [vmem:[%s192 + $0xc8] sm:$0xff]
        %v230 = vld [vmem:[%s192 + $0xd0] sm:$0xff]
        %v231 = vld [vmem:[%s192 + $0xd8] sm:$0xff]
        %v232 = vld [vmem:[%s192 + $0xe0] sm:$0xff]
        %v233 = vld [vmem:[%s192 + $0xe8] sm:$0xff]
        %v234 = vld [vmem:[%s192 + $0xf0] sm:$0xff]
        %v235 = vld [vmem:[%s192 + $0xf8] sm:$0xff]
        %v236 = vld [vmem:[%s192 + $0x100] sm:$0xff]
        %v237 = vld [vmem:[%s192 + $0x108] sm:$0xff]
        %v238 = vld [vmem:[%s192 + $0x110] sm:$0xff]
        %v239 = vld [vmem:[%s192 + $0x118] sm:$0xff]
        %v240 = vld [vmem:[%s192 + $0x120] sm:$0xff]
        %v241 = vld [vmem:[%s192 + $0x128] sm:$0xff]
        %v242 = vld [vmem:[%s192 + $0x130] sm:$0xff]
        %v243 = vld [vmem:[%s192 + $0x138] sm:$0xff]
        %v244 = vld [vmem:[%s192 + $0x140] sm:$0xff]
        %v245 = vld [vmem:[%s192 + $0x148] sm:$0xff]
        %v246 = vld [vmem:[%s192 + $0x150] sm:$0xff]
        %v247 = vld [vmem:[%s192 + $0x158] sm:$0xff]
        %v248 = vld [vmem:[%s192 + $0x160] sm:$0xff]
        %v249 = vld [vmem:[%s192 + $0x168] sm:$0xff]
        %v250 = vld [vmem:[%s192 + $0x170] sm:$0xff]
        %v251 = vld [vmem:[%s192 + $0x178] sm:$0xff]
        %v252 = vmul.f32 %v204, 0.57735026
        %v253 = vmul.f32 %v205, 0.57735026
        %v254 = vmul.f32 %v206, 0.57735026
        %v255 = vmul.f32 %v207, 0.57735026
        %v256 = vmul.f32 %v208, 0.57735026
        %v257 = vmul.f32 %v209, 0.57735026
        %v258 = vmul.f32 %v210, 0.57735026
        %v259 = vmul.f32 %v211, 0.57735026
        %v260 = vmul.f32 %v212, 0.57735026
        %v261 = vmul.f32 %v213, 0.57735026
        %v262 = vmul.f32 %v214, 0.57735026
        %v263 = vmul.f32 %v215, 0.57735026
        %v264 = vmul.f32 %v216, 0.57735026
        %v265 = vmul.f32 %v217, 0.57735026
        %v266 = vmul.f32 %v218, 0.57735026
        %v267 = vmul.f32 %v219, 0.57735026
        %v268 = vmul.f32 %v220, 0.57735026
        %v269 = vmul.f32 %v221, 0.57735026
        %v270 = vmul.f32 %v222, 0.57735026
        %v271 = vmul.f32 %v223, 0.57735026
        %v272 = vmul.f32 %v224, 0.57735026
        %v273 = vmul.f32 %v225, 0.57735026
        %v274 = vmul.f32 %v226, 0.57735026
        %v275 = vmul.f32 %v227, 0.57735026
        %v276 = vmul.f32 %v228, 0.57735026
        %v277 = vmul.f32 %v229, 0.57735026
        %v278 = vmul.f32 %v230, 0.57735026
        %v279 = vmul.f32 %v231, 0.57735026
        %v280 = vmul.f32 %v232, 0.57735026
        %v281 = vmul.f32 %v233, 0.57735026
        %v282 = vmul.f32 %v234, 0.57735026
        %v283 = vmul.f32 %v235, 0.57735026
        %v284 = vmul.f32 %v236, 0.57735026
        %v285 = vmul.f32 %v237, 0.57735026
        %v286 = vmul.f32 %v238, 0.57735026
        %v287 = vmul.f32 %v239, 0.57735026
        %v288 = vmul.f32 %v240, 0.57735026
        %v289 = vmul.f32 %v241, 0.57735026
        %v290 = vmul.f32 %v242, 0.57735026
        %v291 = vmul.f32 %v243, 0.57735026
        %v292 = vmul.f32 %v244, 0.57735026
        %v293 = vmul.f32 %v245, 0.57735026
        %v294 = vmul.f32 %v246, 0.57735026
        %v295 = vmul.f32 %v247, 0.57735026
        %v296 = vmul.f32 %v248, 0.57735026
        %v297 = vmul.f32 %v249, 0.57735026
        %v298 = vmul.f32 %v250, 0.57735026
        %v299 = vmul.f32 %v251, 0.57735026
        %v300 = vpack.c.bf16 %v252, %v252
        %v301 = vpack.c.bf16 %v253, %v253
        %v302 = vpack.c.bf16 %v254, %v254
        %v303 = vpack.c.bf16 %v255, %v255
        %v304 = vpack.c.bf16 %v256, %v256
        %v305 = vpack.c.bf16 %v257, %v257
        %v306 = vpack.c.bf16 %v258, %v258
        %v307 = vpack.c.bf16 %v259, %v259
        %v308 = vpack.c.bf16 %v260, %v260
        %v309 = vpack.c.bf16 %v261, %v261
        %v310 = vpack.c.bf16 %v262, %v262
        %v311 = vpack.c.bf16 %v263, %v263
        %v312 = vpack.c.bf16 %v264, %v264
        %v313 = vpack.c.bf16 %v265, %v265
        %v314 = vpack.c.bf16 %v266, %v266
        %v315 = vpack.c.bf16 %v267, %v267
        %v316 = vpack.c.bf16 %v268, %v268
        %v317 = vpack.c.bf16 %v269, %v269
        %v318 = vpack.c.bf16 %v270, %v270
        %v319 = vpack.c.bf16 %v271, %v271
        %v320 = vpack.c.bf16 %v272, %v272
        %v321 = vpack.c.bf16 %v273, %v273
        %v322 = vpack.c.bf16 %v274, %v274
        %v323 = vpack.c.bf16 %v275, %v275
        %v324 = vpack.c.bf16 %v276, %v276
        %v325 = vpack.c.bf16 %v277, %v277
        %v326 = vpack.c.bf16 %v278, %v278
        %v327 = vpack.c.bf16 %v279, %v279
        %v328 = vpack.c.bf16 %v280, %v280
        %v329 = vpack.c.bf16 %v281, %v281
        %v330 = vpack.c.bf16 %v282, %v282
        %v331 = vpack.c.bf16 %v283, %v283
        %v332 = vpack.c.bf16 %v284, %v284
        %v333 = vpack.c.bf16 %v285, %v285
        %v334 = vpack.c.bf16 %v286, %v286
        %v335 = vpack.c.bf16 %v287, %v287
        %v336 = vpack.c.bf16 %v288, %v288
        %v337 = vpack.c.bf16 %v289, %v289
        %v338 = vpack.c.bf16 %v290, %v290
        %v339 = vpack.c.bf16 %v291, %v291
        %v340 = vpack.c.bf16 %v292, %v292
        %v341 = vpack.c.bf16 %v293, %v293
        %v342 = vpack.c.bf16 %v294, %v294
        %v343 = vpack.c.bf16 %v295, %v295
        %v344 = vpack.c.bf16 %v296, %v296
        %v345 = vpack.c.bf16 %v297, %v297
        %v346 = vpack.c.bf16 %v298, %v298
        %v347 = vpack.c.bf16 %v299, %v299
        %v348 = vld [vmem:[%s200] sm:$0xff]
        %v349 = vld [vmem:[%s200 + $0x8] sm:$0xff]
        %v350 = vld [vmem:[%s200 + $0x10] sm:$0xff]
        %v351 = vld [vmem:[%s200 + $0x18] sm:$0xff]
        %v352 = vld [vmem:[%s200 + $0x20] sm:$0xff]
        %v353 = vld [vmem:[%s200 + $0x28] sm:$0xff]
        %v354 = vld [vmem:[%s200 + $0x30] sm:$0xff]
        %v355 = vld [vmem:[%s200 + $0x38] sm:$0xff]
        %v356 = vld [vmem:[%s200 + $0x40] sm:$0xff]
        %v357 = vld [vmem:[%s200 + $0x48] sm:$0xff]
        %v358 = vld [vmem:[%s200 + $0x50] sm:$0xff]
        %v359 = vld [vmem:[%s200 + $0x58] sm:$0xff]
        %v360 = vld [vmem:[%s200 + $0x60] sm:$0xff]
        %v361 = vld [vmem:[%s200 + $0x68] sm:$0xff]
        %v362 = vld [vmem:[%s200 + $0x70] sm:$0xff]
        %v363 = vld [vmem:[%s200 + $0x78] sm:$0xff]
        %v364 = vld [vmem:[%s200 + $0x80] sm:$0xff]
        %v365 = vld [vmem:[%s200 + $0x88] sm:$0xff]
        %v366 = vld [vmem:[%s200 + $0x90] sm:$0xff]
        %v367 = vld [vmem:[%s200 + $0x98] sm:$0xff]
        %v368 = vld [vmem:[%s200 + $0xa0] sm:$0xff]
        %v369 = vld [vmem:[%s200 + $0xa8] sm:$0xff]
        %v370 = vld [vmem:[%s200 + $0xb0] sm:$0xff]
        %v371 = vld [vmem:[%s200 + $0xb8] sm:$0xff]
        %v372 = vld [vmem:[%s200 + $0xc0] sm:$0xff]
        %v373 = vld [vmem:[%s200 + $0xc8] sm:$0xff]
        %v374 = vld [vmem:[%s200 + $0xd0] sm:$0xff]
        %v375 = vld [vmem:[%s200 + $0xd8] sm:$0xff]
        %v376 = vld [vmem:[%s200 + $0xe0] sm:$0xff]
        %v377 = vld [vmem:[%s200 + $0xe8] sm:$0xff]
        %v378 = vld [vmem:[%s200 + $0xf0] sm:$0xff]
        %v379 = vld [vmem:[%s200 + $0xf8] sm:$0xff]
        %v380 = vld [vmem:[%s200 + $0x100] sm:$0xff]
        %v381 = vld [vmem:[%s200 + $0x108] sm:$0xff]
        %v382 = vld [vmem:[%s200 + $0x110] sm:$0xff]
        %v383 = vld [vmem:[%s200 + $0x118] sm:$0xff]
        %v384 = vld [vmem:[%s200 + $0x120] sm:$0xff]
        %v385 = vld [vmem:[%s200 + $0x128] sm:$0xff]
        %v386 = vld [vmem:[%s200 + $0x130] sm:$0xff]
        %v387 = vld [vmem:[%s200 + $0x138] sm:$0xff]
        %v388 = vld [vmem:[%s200 + $0x140] sm:$0xff]
        %v389 = vld [vmem:[%s200 + $0x148] sm:$0xff]
        %v390 = vld [vmem:[%s200 + $0x150] sm:$0xff]
        %v391 = vld [vmem:[%s200 + $0x158] sm:$0xff]
        %v392 = vld [vmem:[%s200 + $0x160] sm:$0xff]
        %v393 = vld [vmem:[%s200 + $0x168] sm:$0xff]
        %v394 = vld [vmem:[%s200 + $0x170] sm:$0xff]
        %v395 = vld [vmem:[%s200 + $0x178] sm:$0xff]
        %v396 = vpack.c.bf16 %v348, %v348
        %v397 = vpack.c.bf16 %v349, %v349
        %v398 = vpack.c.bf16 %v350, %v350
        %v399 = vpack.c.bf16 %v351, %v351
        %v400 = vpack.c.bf16 %v352, %v352
        %v401 = vpack.c.bf16 %v353, %v353
        %v402 = vpack.c.bf16 %v354, %v354
        %v403 = vpack.c.bf16 %v355, %v355
        %v404 = vpack.c.bf16 %v356, %v356
        %v405 = vpack.c.bf16 %v357, %v357
        %v406 = vpack.c.bf16 %v358, %v358
        %v407 = vpack.c.bf16 %v359, %v359
        %v408 = vpack.c.bf16 %v360, %v360
        %v409 = vpack.c.bf16 %v361, %v361
        %v410 = vpack.c.bf16 %v362, %v362
        %v411 = vpack.c.bf16 %v363, %v363
        %v412 = vpack.c.bf16 %v364, %v364
        %v413 = vpack.c.bf16 %v365, %v365
        %v414 = vpack.c.bf16 %v366, %v366
        %v415 = vpack.c.bf16 %v367, %v367
        %v416 = vpack.c.bf16 %v368, %v368
        %v417 = vpack.c.bf16 %v369, %v369
        %v418 = vpack.c.bf16 %v370, %v370
        %v419 = vpack.c.bf16 %v371, %v371
        %v420 = vpack.c.bf16 %v372, %v372
        %v421 = vpack.c.bf16 %v373, %v373
        %v422 = vpack.c.bf16 %v374, %v374
        %v423 = vpack.c.bf16 %v375, %v375
        %v424 = vpack.c.bf16 %v376, %v376
        %v425 = vpack.c.bf16 %v377, %v377
        %v426 = vpack.c.bf16 %v378, %v378
        %v427 = vpack.c.bf16 %v379, %v379
        %v428 = vpack.c.bf16 %v380, %v380
        %v429 = vpack.c.bf16 %v381, %v381
        %v430 = vpack.c.bf16 %v382, %v382
        %v431 = vpack.c.bf16 %v383, %v383
        %v432 = vpack.c.bf16 %v384, %v384
        %v433 = vpack.c.bf16 %v385, %v385
        %v434 = vpack.c.bf16 %v386, %v386
        %v435 = vpack.c.bf16 %v387, %v387
        %v436 = vpack.c.bf16 %v388, %v388
        %v437 = vpack.c.bf16 %v389, %v389
        %v438 = vpack.c.bf16 %v390, %v390
        %v439 = vpack.c.bf16 %v391, %v391
        %v440 = vpack.c.bf16 %v392, %v392
        %v441 = vpack.c.bf16 %v393, %v393
        %v442 = vpack.c.bf16 %v394, %v394
        %v443 = vpack.c.bf16 %v395, %v395
        %v460 = vunpack.c.l.b16 %v300
        %v461 = vunpack.c.l.b16 %v301
        %v462 = vunpack.c.l.b16 %v302
        %v463 = vunpack.c.l.b16 %v303
        %v464 = vunpack.c.l.b16 %v304
        %v465 = vunpack.c.l.b16 %v305
        %v466 = vunpack.c.l.b16 %v306
        %v467 = vunpack.c.l.b16 %v307
        %v468 = vunpack.c.l.b16 %v308
        %v469 = vunpack.c.l.b16 %v309
        %v470 = vunpack.c.l.b16 %v310
        %v471 = vunpack.c.l.b16 %v311
        %v472 = vunpack.c.l.b16 %v312
        %v473 = vunpack.c.l.b16 %v313
        %v474 = vunpack.c.l.b16 %v314
        %v475 = vunpack.c.l.b16 %v315
        %v476 = vpack.c.b16 %v461, %v460
        %v477 = vpack.c.b16 %v463, %v462
        %v478 = vpack.c.b16 %v465, %v464
        %v479 = vpack.c.b16 %v467, %v466
        %v480 = vpack.c.b16 %v469, %v468
        %v481 = vpack.c.b16 %v471, %v470
        %v482 = vpack.c.b16 %v473, %v472
        %v483 = vpack.c.b16 %v475, %v474
        %v500 = vunpack.c.l.b16 %v396
        %v501 = vunpack.c.l.b16 %v397
        %v502 = vunpack.c.l.b16 %v398
        %v503 = vunpack.c.l.b16 %v399
        %v504 = vunpack.c.l.b16 %v400
        %v505 = vunpack.c.l.b16 %v401
        %v506 = vunpack.c.l.b16 %v402
        %v507 = vunpack.c.l.b16 %v403
        %v508 = vunpack.c.l.b16 %v404
        %v509 = vunpack.c.l.b16 %v405
        %v510 = vunpack.c.l.b16 %v406
        %v511 = vunpack.c.l.b16 %v407
        %v512 = vunpack.c.l.b16 %v408
        %v513 = vunpack.c.l.b16 %v409
        %v514 = vunpack.c.l.b16 %v410
        %v515 = vunpack.c.l.b16 %v411
        %v516 = vpack.c.b16 %v501, %v500
        %v517 = vpack.c.b16 %v503, %v502
        %v518 = vpack.c.b16 %v505, %v504
        %v519 = vpack.c.b16 %v507, %v506
        %v520 = vpack.c.b16 %v509, %v508
        %v521 = vpack.c.b16 %v511, %v510
        %v522 = vpack.c.b16 %v513, %v512
        %v523 = vpack.c.b16 %v515, %v514
        %vm524 = vcmask 261120
        %v526 = vsel %vm524, %v476, 0
        %v529 = vsel %vm524, %v477, 0
        %v532 = vsel %vm524, %v478, 0
        %v535 = vsel %vm524, %v479, 0
        %v538 = vsel %vm524, %v480, 0
        %v541 = vsel %vm524, %v481, 0
        %v544 = vsel %vm524, %v482, 0
        %v547 = vsel %vm524, %v483, 0
        %v550 = vsel %vm524, %v516, 0
        %v553 = vsel %vm524, %v517, 0
        %v556 = vsel %vm524, %v518, 0
        %v559 = vsel %vm524, %v519, 0
        %v562 = vsel %vm524, %v520, 0
        %v565 = vsel %vm524, %v521, 0
        %v568 = vsel %vm524, %v522, 0
        %v571 = vsel %vm524, %v523, 0
        %573 = vmatpush.bf16.xpose.msra.mxu0 %v571
        %574 = vmatpush.bf16.xpose.msra.mxu0 %v568
        %575 = vmatpush.bf16.xpose.msra.mxu0 %v565
        %576 = vmatpush.bf16.xpose.msra.mxu0 %v562
        %577 = vmatpush.bf16.xpose.msra.mxu0 %v559
        %578 = vmatpush.bf16.xpose.msra.mxu0 %v556
        %579 = vmatpush.bf16.xpose.msra.mxu0 %v553
        %580 = vmatpush.bf16.xpose.msra.mxu0 %v550
        %581 = vmatmul.bf16.gmra.mxu0 %v526
        %v582 = vpop.f32.mrf.mxu0
        %v583 = vadd.f32 0.0, %v582
        %v584 = vpop.f32.mrf.mxu0
        %v585 = vadd.f32 0.0, %v584
        %586 = vmatmul.bf16.gmra.mxu0 %v529
        %v587 = vpop.f32.mrf.mxu0
        %v588 = vadd.f32 0.0, %v587
        %v589 = vpop.f32.mrf.mxu0
        %v590 = vadd.f32 0.0, %v589
        %591 = vmatmul.bf16.gmra.mxu0 %v532
        %v592 = vpop.f32.mrf.mxu0
        %v593 = vadd.f32 0.0, %v592
        %v594 = vpop.f32.mrf.mxu0
        %v595 = vadd.f32 0.0, %v594
        %596 = vmatmul.bf16.gmra.mxu0 %v535
        %v597 = vpop.f32.mrf.mxu0
        %v598 = vadd.f32 0.0, %v597
        %v599 = vpop.f32.mrf.mxu0
        %v600 = vadd.f32 0.0, %v599
        %601 = vmatmul.bf16.gmra.mxu0 %v538
        %v602 = vpop.f32.mrf.mxu0
        %v603 = vadd.f32 0.0, %v602
        %v604 = vpop.f32.mrf.mxu0
        %v605 = vadd.f32 0.0, %v604
        %606 = vmatmul.bf16.gmra.mxu0 %v541
        %v607 = vpop.f32.mrf.mxu0
        %v608 = vadd.f32 0.0, %v607
        %v609 = vpop.f32.mrf.mxu0
        %v610 = vadd.f32 0.0, %v609
        %611 = vmatmul.bf16.gmra.mxu0 %v544
        %v612 = vpop.f32.mrf.mxu0
        %v613 = vadd.f32 0.0, %v612
        %v614 = vpop.f32.mrf.mxu0
        %v615 = vadd.f32 0.0, %v614
        %616 = vmatmul.bf16.gmra.mxu0 %v547
        %v617 = vpop.f32.mrf.mxu0
        %v618 = vadd.f32 0.0, %v617
        %v619 = vpop.f32.mrf.mxu0
        %v620 = vadd.f32 0.0, %v619
        %621 = vdwg.mxu0
        %v638 = vunpack.c.l.b16 %v316
        %v639 = vunpack.c.l.b16 %v317
        %v640 = vunpack.c.l.b16 %v318
        %v641 = vunpack.c.l.b16 %v319
        %v642 = vunpack.c.l.b16 %v320
        %v643 = vunpack.c.l.b16 %v321
        %v644 = vunpack.c.l.b16 %v322
        %v645 = vunpack.c.l.b16 %v323
        %v646 = vunpack.c.l.b16 %v324
        %v647 = vunpack.c.l.b16 %v325
        %v648 = vunpack.c.l.b16 %v326
        %v649 = vunpack.c.l.b16 %v327
        %v650 = vunpack.c.l.b16 %v328
        %v651 = vunpack.c.l.b16 %v329
        %v652 = vunpack.c.l.b16 %v330
        %v653 = vunpack.c.l.b16 %v331
        %v654 = vpack.c.b16 %v639, %v638
        %v655 = vpack.c.b16 %v641, %v640
        %v656 = vpack.c.b16 %v643, %v642
        %v657 = vpack.c.b16 %v645, %v644
        %v658 = vpack.c.b16 %v647, %v646
        %v659 = vpack.c.b16 %v649, %v648
        %v660 = vpack.c.b16 %v651, %v650
        %v661 = vpack.c.b16 %v653, %v652
        %v678 = vunpack.c.l.b16 %v412
        %v679 = vunpack.c.l.b16 %v413
        %v680 = vunpack.c.l.b16 %v414
        %v681 = vunpack.c.l.b16 %v415
        %v682 = vunpack.c.l.b16 %v416
        %v683 = vunpack.c.l.b16 %v417
        %v684 = vunpack.c.l.b16 %v418
        %v685 = vunpack.c.l.b16 %v419
        %v686 = vunpack.c.l.b16 %v420
        %v687 = vunpack.c.l.b16 %v421
        %v688 = vunpack.c.l.b16 %v422
        %v689 = vunpack.c.l.b16 %v423
        %v690 = vunpack.c.l.b16 %v424
        %v691 = vunpack.c.l.b16 %v425
        %v692 = vunpack.c.l.b16 %v426
        %v693 = vunpack.c.l.b16 %v427
        %v694 = vpack.c.b16 %v679, %v678
        %v695 = vpack.c.b16 %v681, %v680
        %v696 = vpack.c.b16 %v683, %v682
        %v697 = vpack.c.b16 %v685, %v684
        %v698 = vpack.c.b16 %v687, %v686
        %v699 = vpack.c.b16 %v689, %v688
        %v700 = vpack.c.b16 %v691, %v690
        %v701 = vpack.c.b16 %v693, %v692
        %v703 = vsel %vm524, %v654, 0
        %v706 = vsel %vm524, %v655, 0
        %v709 = vsel %vm524, %v656, 0
        %v712 = vsel %vm524, %v657, 0
        %v715 = vsel %vm524, %v658, 0
        %v718 = vsel %vm524, %v659, 0
        %v721 = vsel %vm524, %v660, 0
        %v724 = vsel %vm524, %v661, 0
        %v727 = vsel %vm524, %v694, 0
        %v730 = vsel %vm524, %v695, 0
        %v733 = vsel %vm524, %v696, 0
        %v736 = vsel %vm524, %v697, 0
        %v739 = vsel %vm524, %v698, 0
        %v742 = vsel %vm524, %v699, 0
        %v745 = vsel %vm524, %v700, 0
        %v748 = vsel %vm524, %v701, 0
        %750 = vmatpush.bf16.xpose.msra.mxu0 %v748
        %751 = vmatpush.bf16.xpose.msra.mxu0 %v745
        %752 = vmatpush.bf16.xpose.msra.mxu0 %v742
        %753 = vmatpush.bf16.xpose.msra.mxu0 %v739
        %754 = vmatpush.bf16.xpose.msra.mxu0 %v736
        %755 = vmatpush.bf16.xpose.msra.mxu0 %v733
        %756 = vmatpush.bf16.xpose.msra.mxu0 %v730
        %757 = vmatpush.bf16.xpose.msra.mxu0 %v727
        %758 = vmatmul.bf16.gmra.mxu0 %v703
        %v759 = vpop.f32.mrf.mxu0
        %v760 = vadd.f32 0.0, %v759
        %v761 = vpop.f32.mrf.mxu0
        %v762 = vadd.f32 0.0, %v761
        %763 = vmatmul.bf16.gmra.mxu0 %v706
        %v764 = vpop.f32.mrf.mxu0
        %v765 = vadd.f32 0.0, %v764
        %v766 = vpop.f32.mrf.mxu0
        %v767 = vadd.f32 0.0, %v766
        %768 = vmatmul.bf16.gmra.mxu0 %v709
        %v769 = vpop.f32.mrf.mxu0
        %v770 = vadd.f32 0.0, %v769
        %v771 = vpop.f32.mrf.mxu0
        %v772 = vadd.f32 0.0, %v771
        %773 = vmatmul.bf16.gmra.mxu0 %v712
        %v774 = vpop.f32.mrf.mxu0
        %v775 = vadd.f32 0.0, %v774
        %v776 = vpop.f32.mrf.mxu0
        %v777 = vadd.f32 0.0, %v776
        %778 = vmatmul.bf16.gmra.mxu0 %v715
        %v779 = vpop.f32.mrf.mxu0
        %v780 = vadd.f32 0.0, %v779
        %v781 = vpop.f32.mrf.mxu0
        %v782 = vadd.f32 0.0, %v781
        %783 = vmatmul.bf16.gmra.mxu0 %v718
        %v784 = vpop.f32.mrf.mxu0
        %v785 = vadd.f32 0.0, %v784
        %v786 = vpop.f32.mrf.mxu0
        %v787 = vadd.f32 0.0, %v786
        %788 = vmatmul.bf16.gmra.mxu0 %v721
        %v789 = vpop.f32.mrf.mxu0
        %v790 = vadd.f32 0.0, %v789
        %v791 = vpop.f32.mrf.mxu0
        %v792 = vadd.f32 0.0, %v791
        %793 = vmatmul.bf16.gmra.mxu0 %v724
        %v794 = vpop.f32.mrf.mxu0
        %v795 = vadd.f32 0.0, %v794
        %v796 = vpop.f32.mrf.mxu0
        %v797 = vadd.f32 0.0, %v796
        %798 = vdwg.mxu0
        %v815 = vunpack.c.l.b16 %v332
        %v816 = vunpack.c.l.b16 %v333
        %v817 = vunpack.c.l.b16 %v334
        %v818 = vunpack.c.l.b16 %v335
        %v819 = vunpack.c.l.b16 %v336
        %v820 = vunpack.c.l.b16 %v337
        %v821 = vunpack.c.l.b16 %v338
        %v822 = vunpack.c.l.b16 %v339
        %v823 = vunpack.c.l.b16 %v340
        %v824 = vunpack.c.l.b16 %v341
        %v825 = vunpack.c.l.b16 %v342
        %v826 = vunpack.c.l.b16 %v343
        %v827 = vunpack.c.l.b16 %v344
        %v828 = vunpack.c.l.b16 %v345
        %v829 = vunpack.c.l.b16 %v346
        %v830 = vunpack.c.l.b16 %v347
        %v831 = vpack.c.b16 %v816, %v815
        %v832 = vpack.c.b16 %v818, %v817
        %v833 = vpack.c.b16 %v820, %v819
        %v834 = vpack.c.b16 %v822, %v821
        %v835 = vpack.c.b16 %v824, %v823
        %v836 = vpack.c.b16 %v826, %v825
        %v837 = vpack.c.b16 %v828, %v827
        %v838 = vpack.c.b16 %v830, %v829
        %v855 = vunpack.c.l.b16 %v428
        %v856 = vunpack.c.l.b16 %v429
        %v857 = vunpack.c.l.b16 %v430
        %v858 = vunpack.c.l.b16 %v431
        %v859 = vunpack.c.l.b16 %v432
        %v860 = vunpack.c.l.b16 %v433
        %v861 = vunpack.c.l.b16 %v434
        %v862 = vunpack.c.l.b16 %v435
        %v863 = vunpack.c.l.b16 %v436
        %v864 = vunpack.c.l.b16 %v437
        %v865 = vunpack.c.l.b16 %v438
        %v866 = vunpack.c.l.b16 %v439
        %v867 = vunpack.c.l.b16 %v440
        %v868 = vunpack.c.l.b16 %v441
        %v869 = vunpack.c.l.b16 %v442
        %v870 = vunpack.c.l.b16 %v443
        %v871 = vpack.c.b16 %v856, %v855
        %v872 = vpack.c.b16 %v858, %v857
        %v873 = vpack.c.b16 %v860, %v859
        %v874 = vpack.c.b16 %v862, %v861
        %v875 = vpack.c.b16 %v864, %v863
        %v876 = vpack.c.b16 %v866, %v865
        %v877 = vpack.c.b16 %v868, %v867
        %v878 = vpack.c.b16 %v870, %v869
        %v880 = vsel %vm524, %v831, 0
        %v883 = vsel %vm524, %v832, 0
        %v886 = vsel %vm524, %v833, 0
        %v889 = vsel %vm524, %v834, 0
        %v892 = vsel %vm524, %v835, 0
        %v895 = vsel %vm524, %v836, 0
        %v898 = vsel %vm524, %v837, 0
        %v901 = vsel %vm524, %v838, 0
        %v904 = vsel %vm524, %v871, 0
        %v907 = vsel %vm524, %v872, 0
        %v910 = vsel %vm524, %v873, 0
        %v913 = vsel %vm524, %v874, 0
        %v916 = vsel %vm524, %v875, 0
        %v919 = vsel %vm524, %v876, 0
        %v922 = vsel %vm524, %v877, 0
        %v925 = vsel %vm524, %v878, 0
        %927 = vmatpush.bf16.xpose.msra.mxu0 %v925
        %928 = vmatpush.bf16.xpose.msra.mxu0 %v922
        %929 = vmatpush.bf16.xpose.msra.mxu0 %v919
        %930 = vmatpush.bf16.xpose.msra.mxu0 %v916
        %931 = vmatpush.bf16.xpose.msra.mxu0 %v913
        %932 = vmatpush.bf16.xpose.msra.mxu0 %v910
        %933 = vmatpush.bf16.xpose.msra.mxu0 %v907
        %934 = vmatpush.bf16.xpose.msra.mxu0 %v904
        %935 = vmatmul.bf16.gmra.mxu0 %v880
        %v936 = vpop.f32.mrf.mxu0
        %v937 = vadd.f32 0.0, %v936
        %v938 = vpop.f32.mrf.mxu0
        %v939 = vadd.f32 0.0, %v938
        %940 = vmatmul.bf16.gmra.mxu0 %v883
        %v941 = vpop.f32.mrf.mxu0
        %v942 = vadd.f32 0.0, %v941
        %v943 = vpop.f32.mrf.mxu0
        %v944 = vadd.f32 0.0, %v943
        %945 = vmatmul.bf16.gmra.mxu0 %v886
        %v946 = vpop.f32.mrf.mxu0
        %v947 = vadd.f32 0.0, %v946
        %v948 = vpop.f32.mrf.mxu0
        %v949 = vadd.f32 0.0, %v948
        %950 = vmatmul.bf16.gmra.mxu0 %v889
        %v951 = vpop.f32.mrf.mxu0
        %v952 = vadd.f32 0.0, %v951
        %v953 = vpop.f32.mrf.mxu0
        %v954 = vadd.f32 0.0, %v953
        %955 = vmatmul.bf16.gmra.mxu0 %v892
        %v956 = vpop.f32.mrf.mxu0
        %v957 = vadd.f32 0.0, %v956
        %v958 = vpop.f32.mrf.mxu0
        %v959 = vadd.f32 0.0, %v958
        %960 = vmatmul.bf16.gmra.mxu0 %v895
        %v961 = vpop.f32.mrf.mxu0
        %v962 = vadd.f32 0.0, %v961
        %v963 = vpop.f32.mrf.mxu0
        %v964 = vadd.f32 0.0, %v963
        %965 = vmatmul.bf16.gmra.mxu0 %v898
        %v966 = vpop.f32.mrf.mxu0
        %v967 = vadd.f32 0.0, %v966
        %v968 = vpop.f32.mrf.mxu0
        %v969 = vadd.f32 0.0, %v968
        %970 = vmatmul.bf16.gmra.mxu0 %v901
        %v971 = vpop.f32.mrf.mxu0
        %v972 = vadd.f32 0.0, %v971
        %v973 = vpop.f32.mrf.mxu0
        %v974 = vadd.f32 0.0, %v973
        %975 = vdwg.mxu0
        %976 = vmax.xlane.f32.xlu0 %v583
        %v977 = vpop.xlane.xlu0 %976
        %978 = vmax.xlane.f32.xlu0 %v585
        %v979 = vpop.xlane.xlu0 %978
        %980 = vmax.xlane.f32.xlu0 %v588
        %v981 = vpop.xlane.xlu0 %980
        %982 = vmax.xlane.f32.xlu0 %v590
        %v983 = vpop.xlane.xlu0 %982
        %984 = vmax.xlane.f32.xlu0 %v593
        %v985 = vpop.xlane.xlu0 %984
        %986 = vmax.xlane.f32.xlu0 %v595
        %v987 = vpop.xlane.xlu0 %986
        %988 = vmax.xlane.f32.xlu0 %v598
        %v989 = vpop.xlane.xlu0 %988
        %990 = vmax.xlane.f32.xlu0 %v600
        %v991 = vpop.xlane.xlu0 %990
        %992 = vmax.xlane.f32.xlu0 %v603
        %v993 = vpop.xlane.xlu0 %992
        %994 = vmax.xlane.f32.xlu0 %v605
        %v995 = vpop.xlane.xlu0 %994
        %996 = vmax.xlane.f32.xlu0 %v608
        %v997 = vpop.xlane.xlu0 %996
        %998 = vmax.xlane.f32.xlu0 %v610
        %v999 = vpop.xlane.xlu0 %998
        %1000 = vmax.xlane.f32.xlu0 %v613
        %v1001 = vpop.xlane.xlu0 %1000
        %1002 = vmax.xlane.f32.xlu0 %v615
        %v1003 = vpop.xlane.xlu0 %1002
        %1004 = vmax.xlane.f32.xlu0 %v618
        %v1005 = vpop.xlane.xlu0 %1004
        %1006 = vmax.xlane.f32.xlu0 %v620
        %v1007 = vpop.xlane.xlu0 %1006
        %1008 = vmax.xlane.f32.xlu0 %v760
        %v1009 = vpop.xlane.xlu0 %1008
        %1010 = vmax.xlane.f32.xlu0 %v762
        %v1011 = vpop.xlane.xlu0 %1010
        %1012 = vmax.xlane.f32.xlu0 %v765
        %v1013 = vpop.xlane.xlu0 %1012
        %1014 = vmax.xlane.f32.xlu0 %v767
        %v1015 = vpop.xlane.xlu0 %1014
        %1016 = vmax.xlane.f32.xlu0 %v770
        %v1017 = vpop.xlane.xlu0 %1016
        %1018 = vmax.xlane.f32.xlu0 %v772
        %v1019 = vpop.xlane.xlu0 %1018
        %1020 = vmax.xlane.f32.xlu0 %v775
        %v1021 = vpop.xlane.xlu0 %1020
        %1022 = vmax.xlane.f32.xlu0 %v777
        %v1023 = vpop.xlane.xlu0 %1022
        %1024 = vmax.xlane.f32.xlu0 %v780
        %v1025 = vpop.xlane.xlu0 %1024
        %1026 = vmax.xlane.f32.xlu0 %v782
        %v1027 = vpop.xlane.xlu0 %1026
        %1028 = vmax.xlane.f32.xlu0 %v785
        %v1029 = vpop.xlane.xlu0 %1028
        %1030 = vmax.xlane.f32.xlu0 %v787
        %v1031 = vpop.xlane.xlu0 %1030
        %1032 = vmax.xlane.f32.xlu0 %v790
        %v1033 = vpop.xlane.xlu0 %1032
        %1034 = vmax.xlane.f32.xlu0 %v792
        %v1035 = vpop.xlane.xlu0 %1034
        %1036 = vmax.xlane.f32.xlu0 %v795
        %v1037 = vpop.xlane.xlu0 %1036
        %1038 = vmax.xlane.f32.xlu0 %v797
        %v1039 = vpop.xlane.xlu0 %1038
        %1040 = vmax.xlane.f32.xlu0 %v937
        %v1041 = vpop.xlane.xlu0 %1040
        %1042 = vmax.xlane.f32.xlu0 %v939
        %v1043 = vpop.xlane.xlu0 %1042
        %1044 = vmax.xlane.f32.xlu0 %v942
        %v1045 = vpop.xlane.xlu0 %1044
        %1046 = vmax.xlane.f32.xlu0 %v944
        %v1047 = vpop.xlane.xlu0 %1046
        %1048 = vmax.xlane.f32.xlu0 %v947
        %v1049 = vpop.xlane.xlu0 %1048
        %1050 = vmax.xlane.f32.xlu0 %v949
        %v1051 = vpop.xlane.xlu0 %1050
        %1052 = vmax.xlane.f32.xlu0 %v952
        %v1053 = vpop.xlane.xlu0 %1052
        %1054 = vmax.xlane.f32.xlu0 %v954
        %v1055 = vpop.xlane.xlu0 %1054
        %1056 = vmax.xlane.f32.xlu0 %v957
        %v1057 = vpop.xlane.xlu0 %1056
        %1058 = vmax.xlane.f32.xlu0 %v959
        %v1059 = vpop.xlane.xlu0 %1058
        %1060 = vmax.xlane.f32.xlu0 %v962
        %v1061 = vpop.xlane.xlu0 %1060
        %1062 = vmax.xlane.f32.xlu0 %v964
        %v1063 = vpop.xlane.xlu0 %1062
        %1064 = vmax.xlane.f32.xlu0 %v967
        %v1065 = vpop.xlane.xlu0 %1064
        %1066 = vmax.xlane.f32.xlu0 %v969
        %v1067 = vpop.xlane.xlu0 %1066
        %1068 = vmax.xlane.f32.xlu0 %v972
        %v1069 = vpop.xlane.xlu0 %1068
        %1070 = vmax.xlane.f32.xlu0 %v974
        %v1071 = vpop.xlane.xlu0 %1070
        %v1072 = vsub.f32 %v583, %v977
        %v1073 = vsub.f32 %v585, %v979
        %v1074 = vsub.f32 %v588, %v981
        %v1075 = vsub.f32 %v590, %v983
        %v1076 = vsub.f32 %v593, %v985
        %v1077 = vsub.f32 %v595, %v987
        %v1078 = vsub.f32 %v598, %v989
        %v1079 = vsub.f32 %v600, %v991
        %v1080 = vsub.f32 %v603, %v993
        %v1081 = vsub.f32 %v605, %v995
        %v1082 = vsub.f32 %v608, %v997
        %v1083 = vsub.f32 %v610, %v999
        %v1084 = vsub.f32 %v613, %v1001
        %v1085 = vsub.f32 %v615, %v1003
        %v1086 = vsub.f32 %v618, %v1005
        %v1087 = vsub.f32 %v620, %v1007
        %v1088 = vsub.f32 %v760, %v1009
        %v1089 = vsub.f32 %v762, %v1011
        %v1090 = vsub.f32 %v765, %v1013
        %v1091 = vsub.f32 %v767, %v1015
        %v1092 = vsub.f32 %v770, %v1017
        %v1093 = vsub.f32 %v772, %v1019
        %v1094 = vsub.f32 %v775, %v1021
        %v1095 = vsub.f32 %v777, %v1023
        %v1096 = vsub.f32 %v780, %v1025
        %v1097 = vsub.f32 %v782, %v1027
        %v1098 = vsub.f32 %v785, %v1029
        %v1099 = vsub.f32 %v787, %v1031
        %v1100 = vsub.f32 %v790, %v1033
        %v1101 = vsub.f32 %v792, %v1035
        %v1102 = vsub.f32 %v795, %v1037
        %v1103 = vsub.f32 %v797, %v1039
        %v1104 = vsub.f32 %v937, %v1041
        %v1105 = vsub.f32 %v939, %v1043
        %v1106 = vsub.f32 %v942, %v1045
        %v1107 = vsub.f32 %v944, %v1047
        %v1108 = vsub.f32 %v947, %v1049
        %v1109 = vsub.f32 %v949, %v1051
        %v1110 = vsub.f32 %v952, %v1053
        %v1111 = vsub.f32 %v954, %v1055
        %v1112 = vsub.f32 %v957, %v1057
        %v1113 = vsub.f32 %v959, %v1059
        %v1114 = vsub.f32 %v962, %v1061
        %v1115 = vsub.f32 %v964, %v1063
        %v1116 = vsub.f32 %v967, %v1065
        %v1117 = vsub.f32 %v969, %v1067
        %v1118 = vsub.f32 %v972, %v1069
        %v1119 = vsub.f32 %v974, %v1071
        %v1120 = vmul.f32 %v1072, 1.442695
        %v1121 = vpow.pop %v1120
        %v1122 = vmul.f32 %v1073, 1.442695
        %v1123 = vpow.pop %v1122
        %v1124 = vmul.f32 %v1074, 1.442695
        %v1125 = vpow.pop %v1124
        %v1126 = vmul.f32 %v1075, 1.442695
        %v1127 = vpow.pop %v1126
        %v1128 = vmul.f32 %v1076, 1.442695
        %v1129 = vpow.pop %v1128
        %v1130 = vmul.f32 %v1077, 1.442695
        %v1131 = vpow.pop %v1130
        %v1132 = vmul.f32 %v1078, 1.442695
        %v1133 = vpow.pop %v1132
        %v1134 = vmul.f32 %v1079, 1.442695
        %v1135 = vpow.pop %v1134
        %v1136 = vmul.f32 %v1080, 1.442695
        %v1137 = vpow.pop %v1136
        %v1138 = vmul.f32 %v1081, 1.442695
        %v1139 = vpow.pop %v1138
        %v1140 = vmul.f32 %v1082, 1.442695
        %v1141 = vpow.pop %v1140
        %v1142 = vmul.f32 %v1083, 1.442695
        %v1143 = vpow.pop %v1142
        %v1144 = vmul.f32 %v1084, 1.442695
        %v1145 = vpow.pop %v1144
        %v1146 = vmul.f32 %v1085, 1.442695
        %v1147 = vpow.pop %v1146
        %v1148 = vmul.f32 %v1086, 1.442695
        %v1149 = vpow.pop %v1148
        %v1150 = vmul.f32 %v1087, 1.442695
        %v1151 = vpow.pop %v1150
        %v1152 = vmul.f32 %v1088, 1.442695
        %v1153 = vpow.pop %v1152
        %v1154 = vmul.f32 %v1089, 1.442695
        %v1155 = vpow.pop %v1154
        %v1156 = vmul.f32 %v1090, 1.442695
        %v1157 = vpow.pop %v1156
        %v1158 = vmul.f32 %v1091, 1.442695
        %v1159 = vpow.pop %v1158
        %v1160 = vmul.f32 %v1092, 1.442695
        %v1161 = vpow.pop %v1160
        %v1162 = vmul.f32 %v1093, 1.442695
        %v1163 = vpow.pop %v1162
        %v1164 = vmul.f32 %v1094, 1.442695
        %v1165 = vpow.pop %v1164
        %v1166 = vmul.f32 %v1095, 1.442695
        %v1167 = vpow.pop %v1166
        %v1168 = vmul.f32 %v1096, 1.442695
        %v1169 = vpow.pop %v1168
        %v1170 = vmul.f32 %v1097, 1.442695
        %v1171 = vpow.pop %v1170
        %v1172 = vmul.f32 %v1098, 1.442695
        %v1173 = vpow.pop %v1172
        %v1174 = vmul.f32 %v1099, 1.442695
        %v1175 = vpow.pop %v1174
        %v1176 = vmul.f32 %v1100, 1.442695
        %v1177 = vpow.pop %v1176
        %v1178 = vmul.f32 %v1101, 1.442695
        %v1179 = vpow.pop %v1178
        %v1180 = vmul.f32 %v1102, 1.442695
        %v1181 = vpow.pop %v1180
        %v1182 = vmul.f32 %v1103, 1.442695
        %v1183 = vpow.pop %v1182
        %v1184 = vmul.f32 %v1104, 1.442695
        %v1185 = vpow.pop %v1184
        %v1186 = vmul.f32 %v1105, 1.442695
        %v1187 = vpow.pop %v1186
        %v1188 = vmul.f32 %v1106, 1.442695
        %v1189 = vpow.pop %v1188
        %v1190 = vmul.f32 %v1107, 1.442695
        %v1191 = vpow.pop %v1190
        %v1192 = vmul.f32 %v1108, 1.442695
        %v1193 = vpow.pop %v1192
        %v1194 = vmul.f32 %v1109, 1.442695
        %v1195 = vpow.pop %v1194
        %v1196 = vmul.f32 %v1110, 1.442695
        %v1197 = vpow.pop %v1196
        %v1198 = vmul.f32 %v1111, 1.442695
        %v1199 = vpow.pop %v1198
        %v1200 = vmul.f32 %v1112, 1.442695
        %v1201 = vpow.pop %v1200
        %v1202 = vmul.f32 %v1113, 1.442695
        %v1203 = vpow.pop %v1202
        %v1204 = vmul.f32 %v1114, 1.442695
        %v1205 = vpow.pop %v1204
        %v1206 = vmul.f32 %v1115, 1.442695
        %v1207 = vpow.pop %v1206
        %v1208 = vmul.f32 %v1116, 1.442695
        %v1209 = vpow.pop %v1208
        %v1210 = vmul.f32 %v1117, 1.442695
        %v1211 = vpow.pop %v1210
        %v1212 = vmul.f32 %v1118, 1.442695
        %v1213 = vpow.pop %v1212
        %v1214 = vmul.f32 %v1119, 1.442695
        %v1215 = vpow.pop %v1214
        %1216 = vadd.xlane.f32.xlu0 %v1121
        %v1217 = vpop.xlane.xlu0 %1216
        %1218 = vadd.xlane.f32.xlu0 %v1123
        %v1219 = vpop.xlane.xlu0 %1218
        %1220 = vadd.xlane.f32.xlu0 %v1125
        %v1221 = vpop.xlane.xlu0 %1220
        %1222 = vadd.xlane.f32.xlu0 %v1127
        %v1223 = vpop.xlane.xlu0 %1222
        %1224 = vadd.xlane.f32.xlu0 %v1129
        %v1225 = vpop.xlane.xlu0 %1224
        %1226 = vadd.xlane.f32.xlu0 %v1131
        %v1227 = vpop.xlane.xlu0 %1226
        %1228 = vadd.xlane.f32.xlu0 %v1133
        %v1229 = vpop.xlane.xlu0 %1228
        %1230 = vadd.xlane.f32.xlu0 %v1135
        %v1231 = vpop.xlane.xlu0 %1230
        %1232 = vadd.xlane.f32.xlu0 %v1137
        %v1233 = vpop.xlane.xlu0 %1232
        %1234 = vadd.xlane.f32.xlu0 %v1139
        %v1235 = vpop.xlane.xlu0 %1234
        %1236 = vadd.xlane.f32.xlu0 %v1141
        %v1237 = vpop.xlane.xlu0 %1236
        %1238 = vadd.xlane.f32.xlu0 %v1143
        %v1239 = vpop.xlane.xlu0 %1238
        %1240 = vadd.xlane.f32.xlu0 %v1145
        %v1241 = vpop.xlane.xlu0 %1240
        %1242 = vadd.xlane.f32.xlu0 %v1147
        %v1243 = vpop.xlane.xlu0 %1242
        %1244 = vadd.xlane.f32.xlu0 %v1149
        %v1245 = vpop.xlane.xlu0 %1244
        %1246 = vadd.xlane.f32.xlu0 %v1151
        %v1247 = vpop.xlane.xlu0 %1246
        %1248 = vadd.xlane.f32.xlu0 %v1153
        %v1249 = vpop.xlane.xlu0 %1248
        %1250 = vadd.xlane.f32.xlu0 %v1155
        %v1251 = vpop.xlane.xlu0 %1250
        %1252 = vadd.xlane.f32.xlu0 %v1157
        %v1253 = vpop.xlane.xlu0 %1252
        %1254 = vadd.xlane.f32.xlu0 %v1159
        %v1255 = vpop.xlane.xlu0 %1254
        %1256 = vadd.xlane.f32.xlu0 %v1161
        %v1257 = vpop.xlane.xlu0 %1256
        %1258 = vadd.xlane.f32.xlu0 %v1163
        %v1259 = vpop.xlane.xlu0 %1258
        %1260 = vadd.xlane.f32.xlu0 %v1165
        %v1261 = vpop.xlane.xlu0 %1260
        %1262 = vadd.xlane.f32.xlu0 %v1167
        %v1263 = vpop.xlane.xlu0 %1262
        %1264 = vadd.xlane.f32.xlu0 %v1169
        %v1265 = vpop.xlane.xlu0 %1264
        %1266 = vadd.xlane.f32.xlu0 %v1171
        %v1267 = vpop.xlane.xlu0 %1266
        %1268 = vadd.xlane.f32.xlu0 %v1173
        %v1269 = vpop.xlane.xlu0 %1268
        %1270 = vadd.xlane.f32.xlu0 %v1175
        %v1271 = vpop.xlane.xlu0 %1270
        %1272 = vadd.xlane.f32.xlu0 %v1177
        %v1273 = vpop.xlane.xlu0 %1272
        %1274 = vadd.xlane.f32.xlu0 %v1179
        %v1275 = vpop.xlane.xlu0 %1274
        %1276 = vadd.xlane.f32.xlu0 %v1181
        %v1277 = vpop.xlane.xlu0 %1276
        %1278 = vadd.xlane.f32.xlu0 %v1183
        %v1279 = vpop.xlane.xlu0 %1278
        %1280 = vadd.xlane.f32.xlu0 %v1185
        %v1281 = vpop.xlane.xlu0 %1280
        %1282 = vadd.xlane.f32.xlu0 %v1187
        %v1283 = vpop.xlane.xlu0 %1282
        %1284 = vadd.xlane.f32.xlu0 %v1189
        %v1285 = vpop.xlane.xlu0 %1284
        %1286 = vadd.xlane.f32.xlu0 %v1191
        %v1287 = vpop.xlane.xlu0 %1286
        %1288 = vadd.xlane.f32.xlu0 %v1193
        %v1289 = vpop.xlane.xlu0 %1288
        %1290 = vadd.xlane.f32.xlu0 %v1195
        %v1291 = vpop.xlane.xlu0 %1290
        %1292 = vadd.xlane.f32.xlu0 %v1197
        %v1293 = vpop.xlane.xlu0 %1292
        %1294 = vadd.xlane.f32.xlu0 %v1199
        %v1295 = vpop.xlane.xlu0 %1294
        %1296 = vadd.xlane.f32.xlu0 %v1201
        %v1297 = vpop.xlane.xlu0 %1296
        %1298 = vadd.xlane.f32.xlu0 %v1203
        %v1299 = vpop.xlane.xlu0 %1298
        %1300 = vadd.xlane.f32.xlu0 %v1205
        %v1301 = vpop.xlane.xlu0 %1300
        %1302 = vadd.xlane.f32.xlu0 %v1207
        %v1303 = vpop.xlane.xlu0 %1302
        %1304 = vadd.xlane.f32.xlu0 %v1209
        %v1305 = vpop.xlane.xlu0 %1304
        %1306 = vadd.xlane.f32.xlu0 %v1211
        %v1307 = vpop.xlane.xlu0 %1306
        %1308 = vadd.xlane.f32.xlu0 %v1213
        %v1309 = vpop.xlane.xlu0 %1308
        %1310 = vadd.xlane.f32.xlu0 %v1215
        %v1311 = vpop.xlane.xlu0 %1310
        %1312 = vst [vmem:[%s182] sm:$0xff] %v1121
        %1313 = vst [vmem:[%s182 + $0x8] sm:$0xff] %v1123
        %1314 = vst [vmem:[%s182 + $0x10] sm:$0xff] %v1125
        %1315 = vst [vmem:[%s182 + $0x18] sm:$0xff] %v1127
        %1316 = vst [vmem:[%s182 + $0x20] sm:$0xff] %v1129
        %1317 = vst [vmem:[%s182 + $0x28] sm:$0xff] %v1131
        %1318 = vst [vmem:[%s182 + $0x30] sm:$0xff] %v1133
        %1319 = vst [vmem:[%s182 + $0x38] sm:$0xff] %v1135
        %1320 = vst [vmem:[%s182 + $0x40] sm:$0xff] %v1137
        %1321 = vst [vmem:[%s182 + $0x48] sm:$0xff] %v1139
        %1322 = vst [vmem:[%s182 + $0x50] sm:$0xff] %v1141
        %1323 = vst [vmem:[%s182 + $0x58] sm:$0xff] %v1143
        %1324 = vst [vmem:[%s182 + $0x60] sm:$0xff] %v1145
        %1325 = vst [vmem:[%s182 + $0x68] sm:$0xff] %v1147
        %1326 = vst [vmem:[%s182 + $0x70] sm:$0xff] %v1149
        %1327 = vst [vmem:[%s182 + $0x78] sm:$0xff] %v1151
        %1328 = vst [vmem:[%s182 + $0x80] sm:$0xff] %v1153
        %1329 = vst [vmem:[%s182 + $0x88] sm:$0xff] %v1155
        %1330 = vst [vmem:[%s182 + $0x90] sm:$0xff] %v1157
        %1331 = vst [vmem:[%s182 + $0x98] sm:$0xff] %v1159
        %1332 = vst [vmem:[%s182 + $0xa0] sm:$0xff] %v1161
        %1333 = vst [vmem:[%s182 + $0xa8] sm:$0xff] %v1163
        %1334 = vst [vmem:[%s182 + $0xb0] sm:$0xff] %v1165
        %1335 = vst [vmem:[%s182 + $0xb8] sm:$0xff] %v1167
        %1336 = vst [vmem:[%s182 + $0xc0] sm:$0xff] %v1169
        %1337 = vst [vmem:[%s182 + $0xc8] sm:$0xff] %v1171
        %1338 = vst [vmem:[%s182 + $0xd0] sm:$0xff] %v1173
        %1339 = vst [vmem:[%s182 + $0xd8] sm:$0xff] %v1175
        %1340 = vst [vmem:[%s182 + $0xe0] sm:$0xff] %v1177
        %1341 = vst [vmem:[%s182 + $0xe8] sm:$0xff] %v1179
        %1342 = vst [vmem:[%s182 + $0xf0] sm:$0xff] %v1181
        %1343 = vst [vmem:[%s182 + $0xf8] sm:$0xff] %v1183
        %1344 = vst [vmem:[%s182 + $0x100] sm:$0xff] %v1185
        %1345 = vst [vmem:[%s182 + $0x108] sm:$0xff] %v1187
        %1346 = vst [vmem:[%s182 + $0x110] sm:$0xff] %v1189
        %1347 = vst [vmem:[%s182 + $0x118] sm:$0xff] %v1191
        %1348 = vst [vmem:[%s182 + $0x120] sm:$0xff] %v1193
        %1349 = vst [vmem:[%s182 + $0x128] sm:$0xff] %v1195
        %1350 = vst [vmem:[%s182 + $0x130] sm:$0xff] %v1197
        %1351 = vst [vmem:[%s182 + $0x138] sm:$0xff] %v1199
        %1352 = vst [vmem:[%s182 + $0x140] sm:$0xff] %v1201
        %1353 = vst [vmem:[%s182 + $0x148] sm:$0xff] %v1203
        %1354 = vst [vmem:[%s182 + $0x150] sm:$0xff] %v1205
        %1355 = vst [vmem:[%s182 + $0x158] sm:$0xff] %v1207
        %1356 = vst [vmem:[%s182 + $0x160] sm:$0xff] %v1209
        %1357 = vst [vmem:[%s182 + $0x168] sm:$0xff] %v1211
        %1358 = vst [vmem:[%s182 + $0x170] sm:$0xff] %v1213
        %1359 = vst [vmem:[%s182 + $0x178] sm:$0xff] %v1215
        %v1360 = vld [vmem:[%s182] sm:$0xff]
        %v1361 = vld [vmem:[%s182 + $0x8] sm:$0xff]
        %v1362 = vld [vmem:[%s182 + $0x10] sm:$0xff]
        %v1363 = vld [vmem:[%s182 + $0x18] sm:$0xff]
        %v1364 = vld [vmem:[%s182 + $0x20] sm:$0xff]
        %v1365 = vld [vmem:[%s182 + $0x28] sm:$0xff]
        %v1366 = vld [vmem:[%s182 + $0x30] sm:$0xff]
        %v1367 = vld [vmem:[%s182 + $0x38] sm:$0xff]
        %v1368 = vld [vmem:[%s182 + $0x40] sm:$0xff]
        %v1369 = vld [vmem:[%s182 + $0x48] sm:$0xff]
        %v1370 = vld [vmem:[%s182 + $0x50] sm:$0xff]
        %v1371 = vld [vmem:[%s182 + $0x58] sm:$0xff]
        %v1372 = vld [vmem:[%s182 + $0x60] sm:$0xff]
        %v1373 = vld [vmem:[%s182 + $0x68] sm:$0xff]
        %v1374 = vld [vmem:[%s182 + $0x70] sm:$0xff]
        %v1375 = vld [vmem:[%s182 + $0x78] sm:$0xff]
        %v1376 = vld [vmem:[%s182 + $0x80] sm:$0xff]
        %v1377 = vld [vmem:[%s182 + $0x88] sm:$0xff]
        %v1378 = vld [vmem:[%s182 + $0x90] sm:$0xff]
        %v1379 = vld [vmem:[%s182 + $0x98] sm:$0xff]
        %v1380 = vld [vmem:[%s182 + $0xa0] sm:$0xff]
        %v1381 = vld [vmem:[%s182 + $0xa8] sm:$0xff]
        %v1382 = vld [vmem:[%s182 + $0xb0] sm:$0xff]
        %v1383 = vld [vmem:[%s182 + $0xb8] sm:$0xff]
        %v1384 = vld [vmem:[%s182 + $0xc0] sm:$0xff]
        %v1385 = vld [vmem:[%s182 + $0xc8] sm:$0xff]
        %v1386 = vld [vmem:[%s182 + $0xd0] sm:$0xff]
        %v1387 = vld [vmem:[%s182 + $0xd8] sm:$0xff]
        %v1388 = vld [vmem:[%s182 + $0xe0] sm:$0xff]
        %v1389 = vld [vmem:[%s182 + $0xe8] sm:$0xff]
        %v1390 = vld [vmem:[%s182 + $0xf0] sm:$0xff]
        %v1391 = vld [vmem:[%s182 + $0xf8] sm:$0xff]
        %v1392 = vld [vmem:[%s182 + $0x100] sm:$0xff]
        %v1393 = vld [vmem:[%s182 + $0x108] sm:$0xff]
        %v1394 = vld [vmem:[%s182 + $0x110] sm:$0xff]
        %v1395 = vld [vmem:[%s182 + $0x118] sm:$0xff]
        %v1396 = vld [vmem:[%s182 + $0x120] sm:$0xff]
        %v1397 = vld [vmem:[%s182 + $0x128] sm:$0xff]
        %v1398 = vld [vmem:[%s182 + $0x130] sm:$0xff]
        %v1399 = vld [vmem:[%s182 + $0x138] sm:$0xff]
        %v1400 = vld [vmem:[%s182 + $0x140] sm:$0xff]
        %v1401 = vld [vmem:[%s182 + $0x148] sm:$0xff]
        %v1402 = vld [vmem:[%s182 + $0x150] sm:$0xff]
        %v1403 = vld [vmem:[%s182 + $0x158] sm:$0xff]
        %v1404 = vld [vmem:[%s182 + $0x160] sm:$0xff]
        %v1405 = vld [vmem:[%s182 + $0x168] sm:$0xff]
        %v1406 = vld [vmem:[%s182 + $0x170] sm:$0xff]
        %v1407 = vld [vmem:[%s182 + $0x178] sm:$0xff]
        %v1408 = vrcp.pop %v1217
        %v1409 = vrcp.pop %v1219
        %v1410 = vrcp.pop %v1221
        %v1411 = vrcp.pop %v1223
        %v1412 = vrcp.pop %v1225
        %v1413 = vrcp.pop %v1227
        %v1414 = vrcp.pop %v1229
        %v1415 = vrcp.pop %v1231
        %v1416 = vrcp.pop %v1233
        %v1417 = vrcp.pop %v1235
        %v1418 = vrcp.pop %v1237
        %v1419 = vrcp.pop %v1239
        %v1420 = vrcp.pop %v1241
        %v1421 = vrcp.pop %v1243
        %v1422 = vrcp.pop %v1245
        %v1423 = vrcp.pop %v1247
        %v1424 = vrcp.pop %v1249
        %v1425 = vrcp.pop %v1251
        %v1426 = vrcp.pop %v1253
        %v1427 = vrcp.pop %v1255
        %v1428 = vrcp.pop %v1257
        %v1429 = vrcp.pop %v1259
        %v1430 = vrcp.pop %v1261
        %v1431 = vrcp.pop %v1263
        %v1432 = vrcp.pop %v1265
        %v1433 = vrcp.pop %v1267
        %v1434 = vrcp.pop %v1269
        %v1435 = vrcp.pop %v1271
        %v1436 = vrcp.pop %v1273
        %v1437 = vrcp.pop %v1275
        %v1438 = vrcp.pop %v1277
        %v1439 = vrcp.pop %v1279
        %v1440 = vrcp.pop %v1281
        %v1441 = vrcp.pop %v1283
        %v1442 = vrcp.pop %v1285
        %v1443 = vrcp.pop %v1287
        %v1444 = vrcp.pop %v1289
        %v1445 = vrcp.pop %v1291
        %v1446 = vrcp.pop %v1293
        %v1447 = vrcp.pop %v1295
        %v1448 = vrcp.pop %v1297
        %v1449 = vrcp.pop %v1299
        %v1450 = vrcp.pop %v1301
        %v1451 = vrcp.pop %v1303
        %v1452 = vrcp.pop %v1305
        %v1453 = vrcp.pop %v1307
        %v1454 = vrcp.pop %v1309
        %v1455 = vrcp.pop %v1311
        %v1456 = vmul.f32 %v1360, %v1408
        %v1457 = vmul.f32 %v1361, %v1409
        %v1458 = vmul.f32 %v1362, %v1410
        %v1459 = vmul.f32 %v1363, %v1411
        %v1460 = vmul.f32 %v1364, %v1412
        %v1461 = vmul.f32 %v1365, %v1413
        %v1462 = vmul.f32 %v1366, %v1414
        %v1463 = vmul.f32 %v1367, %v1415
        %v1464 = vmul.f32 %v1368, %v1416
        %v1465 = vmul.f32 %v1369, %v1417
        %v1466 = vmul.f32 %v1370, %v1418
        %v1467 = vmul.f32 %v1371, %v1419
        %v1468 = vmul.f32 %v1372, %v1420
        %v1469 = vmul.f32 %v1373, %v1421
        %v1470 = vmul.f32 %v1374, %v1422
        %v1471 = vmul.f32 %v1375, %v1423
        %v1472 = vmul.f32 %v1376, %v1424
        %v1473 = vmul.f32 %v1377, %v1425
        %v1474 = vmul.f32 %v1378, %v1426
        %v1475 = vmul.f32 %v1379, %v1427
        %v1476 = vmul.f32 %v1380, %v1428
        %v1477 = vmul.f32 %v1381, %v1429
        %v1478 = vmul.f32 %v1382, %v1430
        %v1479 = vmul.f32 %v1383, %v1431
        %v1480 = vmul.f32 %v1384, %v1432
        %v1481 = vmul.f32 %v1385, %v1433
        %v1482 = vmul.f32 %v1386, %v1434
        %v1483 = vmul.f32 %v1387, %v1435
        %v1484 = vmul.f32 %v1388, %v1436
        %v1485 = vmul.f32 %v1389, %v1437
        %v1486 = vmul.f32 %v1390, %v1438
        %v1487 = vmul.f32 %v1391, %v1439
        %v1488 = vmul.f32 %v1392, %v1440
        %v1489 = vmul.f32 %v1393, %v1441
        %v1490 = vmul.f32 %v1394, %v1442
        %v1491 = vmul.f32 %v1395, %v1443
        %v1492 = vmul.f32 %v1396, %v1444
        %v1493 = vmul.f32 %v1397, %v1445
        %v1494 = vmul.f32 %v1398, %v1446
        %v1495 = vmul.f32 %v1399, %v1447
        %v1496 = vmul.f32 %v1400, %v1448
        %v1497 = vmul.f32 %v1401, %v1449
        %v1498 = vmul.f32 %v1402, %v1450
        %v1499 = vmul.f32 %v1403, %v1451
        %v1500 = vmul.f32 %v1404, %v1452
        %v1501 = vmul.f32 %v1405, %v1453
        %v1502 = vmul.f32 %v1406, %v1454
        %v1503 = vmul.f32 %v1407, %v1455
        %1504 = vst [vmem:[%s182] sm:$0xff] %v1456
        %1505 = vst [vmem:[%s182 + $0x8] sm:$0xff] %v1457
        %1506 = vst [vmem:[%s182 + $0x10] sm:$0xff] %v1458
        %1507 = vst [vmem:[%s182 + $0x18] sm:$0xff] %v1459
        %1508 = vst [vmem:[%s182 + $0x20] sm:$0xff] %v1460
        %1509 = vst [vmem:[%s182 + $0x28] sm:$0xff] %v1461
        %1510 = vst [vmem:[%s182 + $0x30] sm:$0xff] %v1462
        %1511 = vst [vmem:[%s182 + $0x38] sm:$0xff] %v1463
        %1512 = vst [vmem:[%s182 + $0x40] sm:$0xff] %v1464
        %1513 = vst [vmem:[%s182 + $0x48] sm:$0xff] %v1465
        %1514 = vst [vmem:[%s182 + $0x50] sm:$0xff] %v1466
        %1515 = vst [vmem:[%s182 + $0x58] sm:$0xff] %v1467
        %1516 = vst [vmem:[%s182 + $0x60] sm:$0xff] %v1468
        %1517 = vst [vmem:[%s182 + $0x68] sm:$0xff] %v1469
        %1518 = vst [vmem:[%s182 + $0x70] sm:$0xff] %v1470
        %1519 = vst [vmem:[%s182 + $0x78] sm:$0xff] %v1471
        %1520 = vst [vmem:[%s182 + $0x80] sm:$0xff] %v1472
        %1521 = vst [vmem:[%s182 + $0x88] sm:$0xff] %v1473
        %1522 = vst [vmem:[%s182 + $0x90] sm:$0xff] %v1474
        %1523 = vst [vmem:[%s182 + $0x98] sm:$0xff] %v1475
        %1524 = vst [vmem:[%s182 + $0xa0] sm:$0xff] %v1476
        %1525 = vst [vmem:[%s182 + $0xa8] sm:$0xff] %v1477
        %1526 = vst [vmem:[%s182 + $0xb0] sm:$0xff] %v1478
        %1527 = vst [vmem:[%s182 + $0xb8] sm:$0xff] %v1479
        %1528 = vst [vmem:[%s182 + $0xc0] sm:$0xff] %v1480
        %1529 = vst [vmem:[%s182 + $0xc8] sm:$0xff] %v1481
        %1530 = vst [vmem:[%s182 + $0xd0] sm:$0xff] %v1482
        %1531 = vst [vmem:[%s182 + $0xd8] sm:$0xff] %v1483
        %1532 = vst [vmem:[%s182 + $0xe0] sm:$0xff] %v1484
        %1533 = vst [vmem:[%s182 + $0xe8] sm:$0xff] %v1485
        %1534 = vst [vmem:[%s182 + $0xf0] sm:$0xff] %v1486
        %1535 = vst [vmem:[%s182 + $0xf8] sm:$0xff] %v1487
        %1536 = vst [vmem:[%s182 + $0x100] sm:$0xff] %v1488
        %1537 = vst [vmem:[%s182 + $0x108] sm:$0xff] %v1489
        %1538 = vst [vmem:[%s182 + $0x110] sm:$0xff] %v1490
        %1539 = vst [vmem:[%s182 + $0x118] sm:$0xff] %v1491
        %1540 = vst [vmem:[%s182 + $0x120] sm:$0xff] %v1492
        %1541 = vst [vmem:[%s182 + $0x128] sm:$0xff] %v1493
        %1542 = vst [vmem:[%s182 + $0x130] sm:$0xff] %v1494
        %1543 = vst [vmem:[%s182 + $0x138] sm:$0xff] %v1495
        %1544 = vst [vmem:[%s182 + $0x140] sm:$0xff] %v1496
        %1545 = vst [vmem:[%s182 + $0x148] sm:$0xff] %v1497
        %1546 = vst [vmem:[%s182 + $0x150] sm:$0xff] %v1498
        %1547 = vst [vmem:[%s182 + $0x158] sm:$0xff] %v1499
        %1548 = vst [vmem:[%s182 + $0x160] sm:$0xff] %v1500
        %1549 = vst [vmem:[%s182 + $0x168] sm:$0xff] %v1501
        %1550 = vst [vmem:[%s182 + $0x170] sm:$0xff] %v1502
        %1551 = vst [vmem:[%s182 + $0x178] sm:$0xff] %v1503
        %s1552 = sand.u32 %s92, 1
        %s1553 = scalar_lea.sflag [#allocation3], %s1552
        %s1554 = sand.u32 %s92, 1
        %s1555 = smul.addr %s1554, 384
        %s1556 = scalar_lea.vmem [#allocation2], %s1555
        // Predicated region
        $region29: #{tpu_custom_call.1} parent=27 // pred_check
          %p1557 = pneg %p102
        $region30: #{tpu_custom_call.1} parent=27 // pred_check_branch
          %1559 = sbr.rel (%p1557) target = $region32
        $region31: #{tpu_custom_call.1} parent=27 // pred_region
          %s1560 = smul.u32 3, %s20
          %s1561 = smul.u32 16, %s21
          %1563 = vsyncadd %s1553, 0
          %s1564 = smul.addr %s1560, 16
          %s1565 = sadd.s32 %s1561, %s1564
          %s1566 = smul.addr %s1565, 8
          %s1567 = scalar_lea.hbm %s2, %s1566
          %s1568 = sshll.u32 %s1556, 4
          %s1569 = int_to_ptr.vmem [resolvable:$true] %s1568
          %s1570 = sshll.u32 %s1567, 4
          %s1571 = int_to_ptr.hbm [resolvable:$true] %s1570
          %1576 = dma.vmem_to_hbm [thread:$0]  %s1569, 6144, %s1571, %s1553, 128, 128, 8
        $region32: #{tpu_custom_call.1} parent=27 // pred_fallthru
          _
      $region28: #{tpu_custom_call.1} parent=5 // pred_fallthru
        _
      %p1577 = scmp.le.s32.totalorder 2, %s11
      // Predicated region
      $region33: #{tpu_custom_call.1} parent=5 // pred_check
        %p1578 = pneg %p1577
      $region34: #{tpu_custom_call.1} parent=5 // pred_check_branch
        %1580 = sbr.rel (%p1578) target = $region36
      $region35: #{tpu_custom_call.1} parent=5 // pred_region
        %s1581 = ssub.s32 %s11, 2
        // Predicated region
        $region37: #{tpu_custom_call.1} parent=35 // pred_check
          %p1582 = pneg %p108
        $region38: #{tpu_custom_call.1} parent=35 // pred_check_branch
          %1584 = sbr.rel (%p1582) target = $region40
        $region39: #{tpu_custom_call.1} parent=35 // pred_region
          %s1585 = sand.u32 %s93, 1
          %s1586 = scalar_lea.sflag [#allocation3], %s1585
          %s1587 = sand.u32 %s93, 1
          %s1588 = smul.addr %s1587, 384
          %s1589 = scalar_lea.vmem [#allocation2], %s1588
          %1591 = dma.done %s1586, 6144
        $region40: #{tpu_custom_call.1} parent=35 // pred_fallthru
          _
      $region36: #{tpu_custom_call.1} parent=5 // pred_fallthru
        _
    $region6: #{tpu_custom_call.1} parent=1 // loop_footer
      %s15 = sadd.s32 1, %s11
    $region7: #{tpu_custom_call.1} parent=1 // loop_footer_branch
      %10 = sbr.rel target = $region3
    $region8: #{tpu_custom_call.1} parent=1 // loop_exit
      _
    %1592 = vsyncpa [#allocation3], 1
    %s1593 = scalar_lea.sflag [#allocation3], 1
    %1594 = vsyncpa %s1593, 1

</llo_original>
